<compile_context>
chip_gen: v5e
topology: v5e:2x2
jax: 0.10.0
libtpu: 0.0.40
codegen_flags: <defaults>
</compile_context>

<pallas_src>
import jax
import jax.numpy as jnp
from jax.experimental import pallas as pl
from jax.experimental.pallas import tpu as pltpu


# --------------------------------------------------------------------------
# Single-state kernel: one multiply + one lane reduce on VPU/XLU (M=1, no MXU).
# --------------------------------------------------------------------------
def qnetwork_kernel(state_ref,  # (1, 128)  f32, lane 72 = 1.0, lanes 73..127 = 0
                    w_ref,      # (48, 128) f32, fused weight slab (bias at lane 72)
                    c_ref,      # (48, 1)   f32, per-row negative-branch gate
                    out_ref):   # (1, 1)    f32
    s = state_ref[...]                                        # (1, 128)

    # lhs[r, j] = state[j]        if gate row r is  +1  (plain state rows)
    #           = |state[j]|      if gate row r is  -1  (|state| rows)
    #           = relu(state[j])  if gate row r is   0  (relu rows)
    neg = jnp.broadcast_to(s < 0.0, (48, 128))
    c = jnp.broadcast_to(c_ref[...], (48, 128))
    lhs = jnp.broadcast_to(s, (48, 128)) * jnp.where(neg, c, 1.0)

    # One fused contraction for all 5 linear layers (biases via lane 72).
    proj = jnp.sum(w_ref[...] * lhs, axis=-1, keepdims=True)  # (48, 1)

    # Rows 0..15: agent outputs, row 4*j + k = output j of agent k.
    x = jnp.maximum(proj[0:16], 0.0)                          # (16, 1)
    input_w1 = jnp.maximum(jnp.maximum(x[0:4], x[4:8]),
                           jnp.maximum(x[8:12], x[12:16]))    # (4, 1) per-agent max

    W1 = proj[16:20]                                          # (4, 1)
    b1 = proj[24:32]                                          # (8, 1) bias folded
    W2 = proj[32:40]                                          # (8, 1)
    b2 = proj[40:41]                                          # (1, 1) bias folded

    s1 = jnp.sum(W1 * input_w1, axis=0, keepdims=True)        # (1, 1)
    pre = s1 + b1                                             # (8, 1)
    # ELU (alpha=1): exp only on the (clamped) negative branch -> no overflow.
    iw2 = jnp.where(pre > 0.0, pre, jnp.exp(jnp.minimum(pre, 0.0)) - 1.0)
    out_ref[...] = jnp.sum(W2 * iw2, axis=0, keepdims=True) + b2


# --------------------------------------------------------------------------
# Batched kernel: MXU contractions, weights VMEM-resident across the grid.
# --------------------------------------------------------------------------
def qnetwork_batched_kernel(s_ref,    # (TILE_B, 128) f32, lane 72 = 1.0
                            wt_ref,   # (384, 48)     f32, [state; |state|; relu] blocks
                            out_ref): # (TILE_B, 1)   f32
    s = s_ref[...]                                            # (TILE_B, 128)
    a = jnp.abs(s)
    r = jnp.maximum(s, 0.0)

    acc = jnp.dot(s, wt_ref[0:128, :], preferred_element_type=jnp.float32)
    acc = acc + jnp.dot(a, wt_ref[128:256, :], preferred_element_type=jnp.float32)
    acc = acc + jnp.dot(r, wt_ref[256:384, :], preferred_element_type=jnp.float32)
    # acc: (TILE_B, 48), same column layout as the single-state proj rows.

    x = jnp.maximum(acc[:, 0:16], 0.0)                        # agents
    input_w1 = jnp.maximum(jnp.maximum(x[:, 0:4], x[:, 4:8]),
                           jnp.maximum(x[:, 8:12], x[:, 12:16]))   # (TILE_B, 4)

    s1 = jnp.sum(acc[:, 16:20] * input_w1, axis=-1, keepdims=True)  # (TILE_B, 1)
    pre = s1 + acc[:, 24:32]                                         # (TILE_B, 8)
    iw2 = jnp.where(pre > 0.0, pre, jnp.exp(jnp.minimum(pre, 0.0)) - 1.0)
    q = jnp.sum(acc[:, 32:40] * iw2, axis=-1, keepdims=True) + acc[:, 40:41]
    # TODO(synk): emit the batched result lane-dense (batch chunk on the last
    # axis) to avoid masked vst on the (TILE_B, 1) writeback; output bytes are
    # 1/128 of the state-read bytes so it is negligible at these sizes.
    out_ref[...] = q


# --------------------------------------------------------------------------
# Parameter construction (deterministic, PyTorch-Linear-style uniform init).
# --------------------------------------------------------------------------
def init_linear(key, out_dim, in_dim, bias=True):
    kw, kb = jax.random.split(key)
    bound = 1.0 / (in_dim ** 0.5)
    w = jax.random.uniform(kw, (out_dim, in_dim), jnp.float32, -bound, bound)
    b = (jax.random.uniform(kb, (out_dim,), jnp.float32, -bound, bound)
         if bias else None)
    return w, b


def make_params(key, input_dim=72, h1=4, h2=8, out_dim=1):
    keys = jax.random.split(key, 8)
    p = {}
    p["A1_w"], p["A1_b"] = init_linear(keys[0], h1, input_dim - 6)
    p["A2_w"], p["A2_b"] = init_linear(keys[1], h1, input_dim - 6)
    p["A3_w"], p["A3_b"] = init_linear(keys[2], h1, input_dim - 6)
    p["A4_w"], p["A4_b"] = init_linear(keys[3], h1, input_dim - 6)
    p["W1_w"], _ = init_linear(keys[4], h1, input_dim, bias=False)
    p["b1_w"], p["b1_b"] = init_linear(keys[5], h2, input_dim)
    p["W2_w"], _ = init_linear(keys[6], h2, input_dim, bias=False)
    p["b2_w"], p["b2_b"] = init_linear(keys[7], out_dim, input_dim)
    return p


# --------------------------------------------------------------------------
# One-time weight packing: fused (48,128) slab + gate column + (384,48) MXU slab.
# Row layout of the slab / acc columns:
#   rows  0..15 : agents, row 4*j + k = weight row j of agent k+1  (bias @ lane 72)
#   rows 16..23 : W1 (4 real rows)   -> contracts |state|
#   rows 24..31 : b1 (8 rows)        -> contracts  state           (bias @ lane 72)
#   rows 32..39 : W2 (8 rows)        -> contracts |state|
#   rows 40..47 : b2 (1 real row)    -> contracts relu(state)      (bias @ lane 72)
# --------------------------------------------------------------------------
def pack_params(p):
    W = jnp.zeros((48, 128), jnp.float32)
    for k in range(4):
        w = p[f"A{k + 1}_w"]                       # (4, 66)
        b = p[f"A{k + 1}_b"]                       # (4,)
        for j in range(4):
            r = 4 * j + k
            W = W.at[r, 2 * k:2 * k + 2].set(w[j, 0:2])
            W = W.at[r, 8:72].set(w[j, 2:66])
            W = W.at[r, 72].set(b[j])
    W = W.at[16:20, 0:72].set(p["W1_w"])
    W = W.at[24:32, 0:72].set(p["b1_w"])
    W = W.at[24:32, 72].set(p["b1_b"])
    W = W.at[32:40, 0:72].set(p["W2_w"])
    W = W.at[40, 0:72].set(p["b2_w"][0])
    W = W.at[40, 72].set(p["b2_b"][0])

    # Gate value applied to negative state lanes: +1 -> state, -1 -> |state|,
    # 0 -> relu(state).  (Nonnegative lanes, incl. the bias lane, use +1.)
    c = jnp.ones((48, 1), jnp.float32)
    c = c.at[16:24, 0].set(-1.0)
    c = c.at[32:40, 0].set(-1.0)
    c = c.at[40:48, 0].set(0.0)

    # MXU slab: three stacked 128-row blocks contracted against
    # [state_pad ; |state_pad| ; relu(state_pad)] respectively.
    Wt = jnp.zeros((384, 48), jnp.float32)
    Wt = Wt.at[0:128, 0:16].set(W[0:16, :].T)      # agents   (plain state)
    Wt = Wt.at[0:128, 24:32].set(W[24:32, :].T)    # b1       (plain state)
    Wt = Wt.at[128:256, 16:24].set(W[16:24, :].T)  # W1       (|state|)
    Wt = Wt.at[128:256, 32:40].set(W[32:40, :].T)  # W2       (|state|)
    Wt = Wt.at[256:384, 40:48].set(W[40:48, :].T)  # b2       (relu(state))

    return {"W": W, "c": c, "Wt": Wt}


# --------------------------------------------------------------------------
# Forward wrappers.
# --------------------------------------------------------------------------
@jax.jit
def qnetwork_forward(state, packed):
    """Exact module semantics: state (72,) -> output (1,)."""
    s = jnp.concatenate([state,
                         jnp.ones((1,), jnp.float32),      # bias lane 72
                         jnp.zeros((55,), jnp.float32)])[None, :]   # (1, 128)
    out = pl.pallas_call(
        qnetwork_kernel,
        out_shape=jax.ShapeDtypeStruct((1, 1), jnp.float32),
        in_specs=[pl.BlockSpec(memory_space=pltpu.MemorySpace.VMEM)] * 3,
        out_specs=pl.BlockSpec(memory_space=pltpu.MemorySpace.VMEM),
    )(s, packed["W"], packed["c"])
    return out[0]                                  # shape (1,) — matches PyTorch


TILE_B = 128


@jax.jit
def qnetwork_forward_batch(states, wt):
    """Batched variant: states (B, 72) -> (B, 1). B must be a multiple of TILE_B."""
    B = states.shape[0]
    assert B % TILE_B == 0, (B, TILE_B)
    s_pad = jnp.concatenate([states,
                             jnp.ones((B, 1), jnp.float32),
                             jnp.zeros((B, 55), jnp.float32)], axis=-1)  # (B, 128)
    return pl.pallas_call(
        qnetwork_batched_kernel,
        out_shape=jax.ShapeDtypeStruct((B, 1), jnp.float32),
        grid=(B // TILE_B,),
        in_specs=[pl.BlockSpec((TILE_B, 128), lambda i: (i, 0)),
                  pl.BlockSpec((384, 48), lambda i: (0, 0))],   # weights resident
        out_specs=pl.BlockSpec((TILE_B, 1), lambda i: (i, 0)),
        compiler_params=pltpu.CompilerParams(
            dimension_semantics=("parallel",)),
    )(s_pad, wt)


# --------------------------------------------------------------------------
# Pure-JAX reference for correctness checks.
# --------------------------------------------------------------------------
def qnetwork_ref(state, params):
    tail = state[8:72]
    ss = [jnp.concatenate([state[2 * k:2 * k + 2], tail]) for k in range(4)]
    xs = [jnp.maximum(params[f"A{k + 1}_w"] @ ss[k] + params[f"A{k + 1}_b"], 0.0)
          for k in range(4)]
    input_w1 = jnp.stack([jnp.max(x) for x in xs])
    W1 = params["W1_w"] @ jnp.abs(state)
    b1 = params["b1_w"] @ state + params["b1_b"]
    W2 = params["W2_w"] @ jnp.abs(state)
    b2 = params["b2_w"] @ jnp.maximum(state, 0.0) + params["b2_b"]
    pre = jnp.dot(W1, input_w1) + b1
    iw2 = jnp.where(pre > 0.0, pre, jnp.exp(jnp.minimum(pre, 0.0)) - 1.0)
    return jnp.dot(W2, iw2) + b2


if __name__ == "__main__":
    key = jax.random.PRNGKey(0)
    k_param, k_state, k_batch = jax.random.split(key, 3)
    params = make_params(k_param)
    packed = jax.tree_util.tree_map(jax.block_until_ready, pack_params(params))

    # --- single-state path (exact module semantics) ------------------------
    state = jax.random.normal(k_state, (72,), jnp.float32)
    out = jax.block_until_ready(qnetwork_forward(state, packed))
    ref = qnetwork_ref(state, params)
    assert out.shape == (1,), out.shape
    assert jnp.allclose(out, ref, rtol=1e-5, atol=1e-5), (out, ref)

    # --- batched MXU path (same math vectorized over 256 states) -----------
    B = 256
    states = jax.random.normal(k_batch, (B, 72), jnp.float32)
    qb = jax.block_until_ready(qnetwork_forward_batch(states, packed["Wt"]))
    refb = jax.vmap(qnetwork_ref, in_axes=(0, None))(states, params)   # (B, 1)
    assert qb.shape == (B, 1), qb.shape
    # MXU f32 contractions may use reduced-precision passes -> looser tolerance.
    assert jnp.allclose(qb, refb, rtol=2e-2, atol=2e-2), (qb[:4], refb[:4])

    print("KERNEL_OK")
</pallas_src>

<mosaic_0001>
module attributes {stable_mosaic.version = 11 : i64} {
  func.func @qnetwork_kernel(%arg0: memref<1x128xf32, #tpu.memory_space<vmem>>, %arg1: memref<48x128xf32, #tpu.memory_space<vmem>>, %arg2: memref<48x1xf32, #tpu.memory_space<vmem>>, %arg3: memref<1x1xf32, #tpu.memory_space<vmem>>) attributes {dimension_semantics = [], scalar_prefetch = 0 : i64, scratch_operands = 0 : i64, tpu.core_type = #tpu.core_type<tc>} {
    %c0 = arith.constant 0 : index
    %c0_0 = arith.constant 0 : index
    %0 = vector.load %arg0[%c0, %c0_0] : memref<1x128xf32, #tpu.memory_space<vmem>>, vector<1x128xf32>
    %cst = arith.constant 0.000000e+00 : f32
    %1 = vector.broadcast %cst : f32 to vector<1x128xf32>
    %2 = arith.cmpf olt, %0, %1 : vector<1x128xf32>
    %3 = vector.shape_cast %2 : vector<1x128xi1> to vector<1x128xi1>
    %4 = vector.broadcast %3 : vector<1x128xi1> to vector<48x128xi1>
    %c0_1 = arith.constant 0 : index
    %c0_2 = arith.constant 0 : index
    %5 = vector.load %arg2[%c0_1, %c0_2] : memref<48x1xf32, #tpu.memory_space<vmem>>, vector<48x1xf32>
    %6 = vector.shape_cast %5 : vector<48x1xf32> to vector<48x1xf32>
    %7 = vector.broadcast %6 : vector<48x1xf32> to vector<48x128xf32>
    %8 = vector.shape_cast %0 : vector<1x128xf32> to vector<1x128xf32>
    %9 = vector.broadcast %8 : vector<1x128xf32> to vector<48x128xf32>
    %cst_3 = arith.constant 1.000000e+00 : f32
    %10 = vector.broadcast %cst_3 : f32 to vector<48x128xf32>
    %11 = arith.select %4, %7, %10 : vector<48x128xi1>, vector<48x128xf32>
    %12 = arith.mulf %9, %11 : vector<48x128xf32>
    %c0_4 = arith.constant 0 : index
    %c0_5 = arith.constant 0 : index
    %13 = vector.load %arg1[%c0_4, %c0_5] : memref<48x128xf32, #tpu.memory_space<vmem>>, vector<48x128xf32>
    %14 = arith.mulf %13, %12 : vector<48x128xf32>
    %cst_6 = arith.constant dense<0.000000e+00> : vector<48xf32>
    %15 = vector.multi_reduction <add>, %14, %cst_6 [1] : vector<48x128xf32> to vector<48xf32>
    %16 = vector.shape_cast %15 : vector<48xf32> to vector<48x1xf32>
    %17 = vector.extract_strided_slice %16 {offsets = [0, 0], sizes = [16, 1], strides = [1, 1]} : vector<48x1xf32> to vector<16x1xf32>
    %cst_7 = arith.constant 0.000000e+00 : f32
    %18 = vector.broadcast %cst_7 : f32 to vector<16x1xf32>
    %19 = arith.maximumf %17, %18 : vector<16x1xf32>
    %20 = vector.extract_strided_slice %19 {offsets = [0, 0], sizes = [4, 1], strides = [1, 1]} : vector<16x1xf32> to vector<4x1xf32>
    %21 = vector.extract_strided_slice %19 {offsets = [4, 0], sizes = [4, 1], strides = [1, 1]} : vector<16x1xf32> to vector<4x1xf32>
    %22 = arith.maximumf %20, %21 : vector<4x1xf32>
    %23 = vector.extract_strided_slice %19 {offsets = [8, 0], sizes = [4, 1], strides = [1, 1]} : vector<16x1xf32> to vector<4x1xf32>
    %24 = vector.extract_strided_slice %19 {offsets = [12, 0], sizes = [4, 1], strides = [1, 1]} : vector<16x1xf32> to vector<4x1xf32>
    %25 = arith.maximumf %23, %24 : vector<4x1xf32>
    %26 = arith.maximumf %22, %25 : vector<4x1xf32>
    %27 = vector.extract_strided_slice %16 {offsets = [16, 0], sizes = [4, 1], strides = [1, 1]} : vector<48x1xf32> to vector<4x1xf32>
    %28 = vector.extract_strided_slice %16 {offsets = [24, 0], sizes = [8, 1], strides = [1, 1]} : vector<48x1xf32> to vector<8x1xf32>
    %29 = vector.extract_strided_slice %16 {offsets = [32, 0], sizes = [8, 1], strides = [1, 1]} : vector<48x1xf32> to vector<8x1xf32>
    %30 = vector.extract_strided_slice %16 {offsets = [40, 0], sizes = [1, 1], strides = [1, 1]} : vector<48x1xf32> to vector<1x1xf32>
    %31 = arith.mulf %27, %26 : vector<4x1xf32>
    %cst_8 = arith.constant dense<0.000000e+00> : vector<1xf32>
    %32 = vector.multi_reduction <add>, %31, %cst_8 [0] : vector<4x1xf32> to vector<1xf32>
    %33 = vector.shape_cast %32 : vector<1xf32> to vector<1x1xf32>
    %34 = vector.broadcast %33 : vector<1x1xf32> to vector<8x1xf32>
    %35 = arith.addf %34, %28 : vector<8x1xf32>
    %cst_9 = arith.constant 0.000000e+00 : f32
    %36 = vector.broadcast %cst_9 : f32 to vector<8x1xf32>
    %37 = arith.cmpf ogt, %35, %36 : vector<8x1xf32>
    %cst_10 = arith.constant 0.000000e+00 : f32
    %38 = vector.broadcast %cst_10 : f32 to vector<8x1xf32>
    %39 = arith.minimumf %35, %38 : vector<8x1xf32>
    %40 = math.exp %39 : vector<8x1xf32>
    %cst_11 = arith.constant 1.000000e+00 : f32
    %41 = vector.broadcast %cst_11 : f32 to vector<8x1xf32>
    %42 = arith.subf %40, %41 : vector<8x1xf32>
    %43 = arith.select %37, %35, %42 : vector<8x1xi1>, vector<8x1xf32>
    %44 = arith.mulf %29, %43 : vector<8x1xf32>
    %cst_12 = arith.constant dense<0.000000e+00> : vector<1xf32>
    %45 = vector.multi_reduction <add>, %44, %cst_12 [0] : vector<8x1xf32> to vector<1xf32>
    %46 = vector.shape_cast %45 : vector<1xf32> to vector<1x1xf32>
    %47 = arith.addf %46, %30 : vector<1x1xf32>
    %c0_13 = arith.constant 0 : index
    %c0_14 = arith.constant 0 : index
    %48 = vector.load %arg3[%c0_13, %c0_14] : memref<1x1xf32, #tpu.memory_space<vmem>>, vector<1x1xf32>
    tpu.vector_store %arg3[%c0_13, %c0_14], %47 {strides = array<i32>} : memref<1x1xf32, #tpu.memory_space<vmem>>, vector<1x1xf32>,
    return
  }
}

</mosaic_0001>

<llo_original>
// kernel: qnetwork_forward.1
$region0: #{qnetwork_forward.1}
  #allocation0 [shape = 'u32[]', space=smem, size = 0x4, offset = 0x4, fixed_abs, tag = 'smem constant byte address 0x4 - core index']
  #allocation1 [shape = 'u32[72,128]{1,0:T(1,128)}', space=vmem, size = 0x9000, scoped, tag = 'internal scratch']
  %s0 = inlined_call_operand.vmem [shape: f32[1,128], index: 0, kind: input, shape index: {}]
  %s1 = inlined_call_operand.vmem [shape: f32[48,128], index: 1, kind: input, shape index: {}]
  %s2 = inlined_call_operand.vmem [shape: f32[48,1], index: 2, kind: input, shape index: {}]
  %s3 = inlined_call_operand.hbm [shape: f32[1,1], index: 3, kind: output, shape index: {}]
  %s4 = sld [smem:[#allocation0]]
  $region22: #{qnetwork_forward.1} parent=0
    _
  %s6 = ssub.s32 1, %s4
  %s7 = scalar_select 0, %s6, %s4
  $region1: #{qnetwork_forward.1} parent=0
    #allocation2 [shape = 'u8[512]{0}', space=vmem, size = 0x400, scoped, tag = 'output window, operand 0, single buffered']
    #allocation3 [shape = 's32[1]{0}', space=sflag, size = 0x4, scoped, tag = 'scoped memory for qnetwork_forward.1']
    %8 = vsyncpa [#allocation3], 0
    // Predicated region
    $region2: #{qnetwork_forward.1} parent=1 // pred_check
      _
    $region3: #{qnetwork_forward.1} parent=1 // pred_check_branch
      %10 = sbr.rel (0) target = $region5
    $region4: #{qnetwork_forward.1} parent=1 // pred_region
      _
    $region5: #{qnetwork_forward.1} parent=1 // pred_fallthru
      _
    // Predicated region
    $region6: #{qnetwork_forward.1} parent=1 // pred_check
      _
    $region7: #{qnetwork_forward.1} parent=1 // pred_check_branch
      %12 = sbr.rel (0) target = $region9
    $region8: #{qnetwork_forward.1} parent=1 // pred_region
      _
    $region9: #{qnetwork_forward.1} parent=1 // pred_fallthru
      _
    // Predicated region
    $region10: #{qnetwork_forward.1} parent=1 // pred_check
      _
    $region11: #{qnetwork_forward.1} parent=1 // pred_check_branch
      %14 = sbr.rel (0) target = $region13
    $region12: #{qnetwork_forward.1} parent=1 // pred_region
      _
    $region13: #{qnetwork_forward.1} parent=1 // pred_fallthru
      _
    %v15 = vld [vmem:[%s0] sm:$0x1]
    %vm16 = vcmp.lt.f32.partialorder %v15, 0.0
    %v17 = vsel %vm16, 1, 0
    %v18 = vperm.slane %v17, 0
    %vm19 = vcmp.eq.s32.totalorder %v18, 1
    %v20 = vld [vmem:[%s2] sm:$0xff]
    %v21 = vld [vmem:[%s2 + $0x8] sm:$0xff]
    %v22 = vld [vmem:[%s2 + $0x10] sm:$0xff]
    %v23 = vld [vmem:[%s2 + $0x18] sm:$0xff]
    %v24 = vld [vmem:[%s2 + $0x20] sm:$0xff]
    %v25 = vld [vmem:[%s2 + $0x28] sm:$0xff]
    %27 = vset.pattern.permute.xlu0 0
    %28 = vperm.xlu0 %27, %v20
    %v29 = vpop.permute.xlu0 %28
    %32 = vset.pattern.permute.xlu0 0
    %33 = vperm.xlu0 %32, %v21
    %v34 = vpop.permute.xlu0 %33
    %37 = vset.pattern.permute.xlu0 0
    %38 = vperm.xlu0 %37, %v22
    %v39 = vpop.permute.xlu0 %38
    %42 = vset.pattern.permute.xlu0 0
    %43 = vperm.xlu0 %42, %v23
    %v44 = vpop.permute.xlu0 %43
    %47 = vset.pattern.permute.xlu0 0
    %48 = vperm.xlu0 %47, %v24
    %v49 = vpop.permute.xlu0 %48
    %52 = vset.pattern.permute.xlu0 0
    %53 = vperm.xlu0 %52, %v25
    %v54 = vpop.permute.xlu0 %53
    %v57 = vperm.slane %v15, 0
    %v59 = vsel %vm19, %v29, 1.0
    %v60 = vsel %vm19, %v34, 1.0
    %v61 = vsel %vm19, %v39, 1.0
    %v62 = vsel %vm19, %v44, 1.0
    %v63 = vsel %vm19, %v49, 1.0
    %v64 = vsel %vm19, %v54, 1.0
    %v65 = vmul.f32 %v57, %v59
    %v66 = vmul.f32 %v57, %v60
    %v67 = vmul.f32 %v57, %v61
    %v68 = vmul.f32 %v57, %v62
    %v69 = vmul.f32 %v57, %v63
    %v70 = vmul.f32 %v57, %v64
    %v71 = vld [vmem:[%s1] sm:$0xff]
    %v72 = vld [vmem:[%s1 + $0x8] sm:$0xff]
    %v73 = vld [vmem:[%s1 + $0x10] sm:$0xff]
    %v74 = vld [vmem:[%s1 + $0x18] sm:$0xff]
    %v75 = vld [vmem:[%s1 + $0x20] sm:$0xff]
    %v76 = vld [vmem:[%s1 + $0x28] sm:$0xff]
    %v77 = vmul.f32 %v71, %v65
    %v78 = vmul.f32 %v72, %v66
    %v79 = vmul.f32 %v73, %v67
    %v80 = vmul.f32 %v74, %v68
    %v81 = vmul.f32 %v75, %v69
    %v82 = vmul.f32 %v76, %v70
    %83 = vadd.xlane.f32.xlu0 %v77
    %v84 = vpop.xlane.xlu0 %83
    %85 = vadd.xlane.f32.xlu0 %v78
    %v86 = vpop.xlane.xlu0 %85
    %87 = vadd.xlane.f32.xlu0 %v79
    %v88 = vpop.xlane.xlu0 %87
    %89 = vadd.xlane.f32.xlu0 %v80
    %v90 = vpop.xlane.xlu0 %89
    %91 = vadd.xlane.f32.xlu0 %v81
    %v92 = vpop.xlane.xlu0 %91
    %93 = vadd.xlane.f32.xlu0 %v82
    %v94 = vpop.xlane.xlu0 %93
    %v95 = vmax.f32 %v84, 0.0
    %v96 = vmax.f32 %v86, 0.0
    %v98 = vrot.slane %v95, 4
    %v100 = vmax.f32 %v95, %v98
    %v102 = vrot.slane %v96, 4
    %v104 = vmax.f32 %v96, %v102
    %v105 = vmax.f32 %v100, %v104
    %v106 = vmul.f32 %v88, %v105
    %vm107 = vcmask 3072
    %v108 = vsel %vm107, %v106, 0.0
    %v109 = vrot.slane %v108, 4
    %v110 = vadd.f32 %v108, %v109
    %v111 = vrot.slane %v110, 2
    %v112 = vadd.f32 %v110, %v111
    %v113 = vrot.slane %v112, 1
    %v114 = vadd.f32 %v112, %v113
    %v115 = vadd.f32 %v114, %v90
    %vm116 = vcmp.gt.f32.partialorder %v115, 0.0
    %v117 = vmin.f32 %v115, 0.0
    %v118 = vmul.f32 %v117, 1.442695
    %v119 = vpow.pop %v118
    %v120 = vsub.f32 %v119, 1.0
    %v121 = vsel %vm116, %v115, %v120
    %v122 = vmul.f32 %v92, %v121
    %vm123 = vcmask 7168
    %v124 = vsel %vm123, %v122, 0.0
    %v125 = vrot.slane %v124, 4
    %v126 = vadd.f32 %v124, %v125
    %v127 = vrot.slane %v126, 2
    %v128 = vadd.f32 %v126, %v127
    %v129 = vrot.slane %v128, 1
    %v130 = vadd.f32 %v128, %v129
    %v131 = vadd.f32 %v130, %v94
    %vm132 = vcmask 0
    %133 = vst.msk [vmem:[#allocation2] sm:$0x1] %vm132, %v131
    // Predicated region
    $region14: #{qnetwork_forward.1} parent=1 // pred_check
      _
    $region15: #{qnetwork_forward.1} parent=1 // pred_check_branch
      %135 = sbr.rel (0) target = $region17
    $region16: #{qnetwork_forward.1} parent=1 // pred_region
      %137 = vsyncadd [#allocation3], 0
      %s139 = sshll.u32 [#allocation2], 4
      %s140 = int_to_ptr.vmem [resolvable:$true] %s139
      %s141 = sshll.u32 %s3, 4
      %s142 = int_to_ptr.hbm [resolvable:$true] %s141
      %144 = dma.vmem_to_hbm [thread:$0]  %s140, 16, %s142, [#allocation3]
    $region17: #{qnetwork_forward.1} parent=1 // pred_fallthru
      _
    // Predicated region
    $region18: #{qnetwork_forward.1} parent=1 // pred_check
      _
    $region19: #{qnetwork_forward.1} parent=1 // pred_check_branch
      %146 = sbr.rel (0) target = $region21
    $region20: #{qnetwork_forward.1} parent=1 // pred_region
      %148 = dma.done [#allocation3], 16
    $region21: #{qnetwork_forward.1} parent=1 // pred_fallthru
      _
    %149 = vsyncpa [#allocation3], 1

</llo_original>
